<compile_context>
chip_gen: v6e
topology: v6e:2x2x1
jax: 0.10.0
libtpu: 0.0.40
codegen_flags: <defaults>
</compile_context>

<pallas_src>
import jax
import jax.numpy as jnp
from jax.experimental import pallas as pl
from jax.experimental.pallas import tpu as pltpu


def _round_up(n, m):
    return ((n + m - 1) // m) * m


def _policy_value_kernel(x_ref, w1_ref, b1_ref, w2_ref, b2_ref,
                         wh_ref, bh_ref, out_ref):
    # ---- Layer 1 (Linear + ReLU) on the VPU: contraction dim is only 2, so
    # an MXU pass would use 2/128 (v5e) or 2/256 (v6e/v7x) rows for nothing.
    input_dim = x_ref.shape[1]
    h1 = x_ref[:, 0:1] * w1_ref[0:1, :]          # [TB,1] * [1,H] -> [TB,H]
    for k in range(1, input_dim):                 # static tiny loop (input_dim=2)
        h1 = h1 + x_ref[:, k:k + 1] * w1_ref[k:k + 1, :]
    h1 = jnp.maximum(h1 + b1_ref[...], 0.0)

    # ---- Layer 2 (Linear + ReLU) on the MXU.
    h2 = jnp.dot(h1, w2_ref[...], preferred_element_type=jnp.float32)
    h2 = jnp.maximum(h2 + b2_ref[...], 0.0)

    # ---- Fused policy+value head, lane-dense (128-wide, zero-padded) output.
    out_ref[...] = (
        jnp.dot(h2, wh_ref[...], preferred_element_type=jnp.float32)
        + bh_ref[...]
    )


def policy_value_forward(x, params, tile_b=1024):
    """PolicyValueNet forward in one Pallas kernel.

    x: [B, input_dim] float32
    params: dict of w1,b1,w2,b2,wp,bp,wv,bv (weights [in,out], biases [1,out])
    returns: (logits [B, action_dim], value [B, 1])
    """
    B, input_dim = x.shape
    hidden_dim = params["w1"].shape[1]
    action_dim = params["wp"].shape[1]
    head_out = action_dim + 1                      # logits || value
    head_pad = max(128, _round_up(head_out, 128))  # lane-dense output slab

    # Fuse the two heads into one padded weight/bias (cheap XLA-side prep).
    wh = jnp.concatenate([params["wp"], params["wv"]], axis=1)
    bh = jnp.concatenate([params["bp"], params["bv"]], axis=1)
    wh = jnp.pad(wh, ((0, 0), (0, head_pad - head_out)))
    bh = jnp.pad(bh, ((0, 0), (0, head_pad - head_out)))

    # Row tile: multiple of 8, capped at tile_b; pad batch to a whole number
    # of tiles (padded rows are sliced off below).
    tb = min(tile_b, _round_up(B, 8))
    b_pad = _round_up(B, tb)
    if b_pad != B:
        x = jnp.pad(x, ((0, b_pad - B), (0, 0)))
    grid = (b_pad // tb,)

    operands = (x, params["w1"], params["b1"], params["w2"], params["b2"],
                wh, bh)

    in_specs = [
        pl.BlockSpec((tb, input_dim), lambda i: (i, 0)),          # x (tiled)
        pl.BlockSpec((input_dim, hidden_dim), lambda i: (0, 0)),  # w1 (resident)
        pl.BlockSpec((1, hidden_dim), lambda i: (0, 0)),          # b1
        pl.BlockSpec((hidden_dim, hidden_dim), lambda i: (0, 0)), # w2
        pl.BlockSpec((1, hidden_dim), lambda i: (0, 0)),          # b2
        pl.BlockSpec((hidden_dim, head_pad), lambda i: (0, 0)),   # fused head W
        pl.BlockSpec((1, head_pad), lambda i: (0, 0)),            # fused head b
    ]
    out_specs = pl.BlockSpec((tb, head_pad), lambda i: (i, 0))
    out_shape = jax.ShapeDtypeStruct((b_pad, head_pad), jnp.float32)

    out = pl.pallas_call(
        _policy_value_kernel,
        grid=grid,
        in_specs=in_specs,
        out_specs=out_specs,
        out_shape=out_shape,
        compiler_params=pltpu.CompilerParams(
            dimension_semantics=("parallel",),   # v7x: shard batch tiles across TCs
        ),
    )(*operands)

    logits = out[:B, :action_dim]
    value = out[:B, action_dim:action_dim + 1]
    return logits, value


def init_params(key, input_dim=2, hidden_dim=64, action_dim=4):
    """Deterministic synthetic parameters (shapes match the PyTorch module)."""
    ks = jax.random.split(key, 8)

    def lin(kw, kb, fan_in, fan_out):
        # PyTorch-style uniform(-1/sqrt(fan_in), 1/sqrt(fan_in)) init.
        bound = 1.0 / jnp.sqrt(jnp.float32(fan_in))
        w = jax.random.uniform(kw, (fan_in, fan_out), jnp.float32, -bound, bound)
        b = jax.random.uniform(kb, (1, fan_out), jnp.float32, -bound, bound)
        return w, b

    w1, b1 = lin(ks[0], ks[1], input_dim, hidden_dim)
    w2, b2 = lin(ks[2], ks[3], hidden_dim, hidden_dim)
    wp, bp = lin(ks[4], ks[5], hidden_dim, action_dim)
    wv, bv = lin(ks[6], ks[7], hidden_dim, 1)
    return dict(w1=w1, b1=b1, w2=w2, b2=b2, wp=wp, bp=bp, wv=wv, bv=bv)


def _reference_forward(x, p):
    h = jnp.maximum(x @ p["w1"] + p["b1"], 0.0)
    h = jnp.maximum(h @ p["w2"] + p["b2"], 0.0)
    return h @ p["wp"] + p["bp"], h @ p["wv"] + p["bv"]


if __name__ == "__main__":
    key = jax.random.PRNGKey(0)
    k_x, k_p = jax.random.split(key)

    B, input_dim, hidden_dim, action_dim = 8, 2, 64, 4
    x = jax.random.normal(k_x, (B, input_dim), jnp.float32)
    params = init_params(k_p, input_dim, hidden_dim, action_dim)

    logits, value = policy_value_forward(x, params)
    jax.block_until_ready((logits, value))

    # Sanity check against a pure-JAX reference.
    ref_logits, ref_value = _reference_forward(x, params)
    assert logits.shape == (B, action_dim) and value.shape == (B, 1)
    assert jnp.allclose(logits, ref_logits, atol=1e-5, rtol=1e-5)
    assert jnp.allclose(value, ref_value, atol=1e-5, rtol=1e-5)

    print("KERNEL_OK")
</pallas_src>

<mosaic_0001>
module attributes {stable_mosaic.version = 11 : i64} {
  func.func @_policy_value_kernel(%arg0: i32, %arg1: memref<8x2xf32, #tpu.memory_space<vmem>>, %arg2: memref<2x64xf32, #tpu.memory_space<vmem>>, %arg3: memref<1x64xf32, #tpu.memory_space<vmem>>, %arg4: memref<64x64xf32, #tpu.memory_space<vmem>>, %arg5: memref<1x64xf32, #tpu.memory_space<vmem>>, %arg6: memref<64x128xf32, #tpu.memory_space<vmem>>, %arg7: memref<1x128xf32, #tpu.memory_space<vmem>>, %arg8: memref<8x128xf32, #tpu.memory_space<vmem>>) attributes {dimension_semantics = [#tpu.dimension_semantics<parallel>], iteration_bounds = array<i64: 1>, scalar_prefetch = 0 : i64, scratch_operands = 0 : i64, tpu.core_type = #tpu.core_type<tc>, window_params = [{transform_indices = @transform_0, window_bounds = array<i64: 8, 2>}, {pipeline_mode = #tpu.pipeline_mode<synchronous>, transform_indices = @transform_1, window_bounds = array<i64: 2, 64>}, {pipeline_mode = #tpu.pipeline_mode<synchronous>, transform_indices = @transform_2, window_bounds = array<i64: 1, 64>}, {pipeline_mode = #tpu.pipeline_mode<synchronous>, transform_indices = @transform_3, window_bounds = array<i64: 64, 64>}, {pipeline_mode = #tpu.pipeline_mode<synchronous>, transform_indices = @transform_4, window_bounds = array<i64: 1, 64>}, {pipeline_mode = #tpu.pipeline_mode<synchronous>, transform_indices = @transform_5, window_bounds = array<i64: 64, 128>}, {pipeline_mode = #tpu.pipeline_mode<synchronous>, transform_indices = @transform_6, window_bounds = array<i64: 1, 128>}, {transform_indices = @transform_7, window_bounds = array<i64: 8, 128>}]} {
    %c0 = arith.constant 0 : index
    %c0_0 = arith.constant 0 : index
    %0 = vector.load %arg1[%c0, %c0_0] : memref<8x2xf32, #tpu.memory_space<vmem>>, vector<8x1xf32>
    %c0_1 = arith.constant 0 : index
    %c0_2 = arith.constant 0 : index
    %1 = vector.load %arg2[%c0_1, %c0_2] : memref<2x64xf32, #tpu.memory_space<vmem>>, vector<1x64xf32>
    %2 = vector.broadcast %0 : vector<8x1xf32> to vector<8x64xf32>
    %3 = vector.broadcast %1 : vector<1x64xf32> to vector<8x64xf32>
    %4 = arith.mulf %2, %3 : vector<8x64xf32>
    %c0_3 = arith.constant 0 : index
    %c1 = arith.constant 1 : index
    %5 = vector.load %arg1[%c0_3, %c1] : memref<8x2xf32, #tpu.memory_space<vmem>>, vector<8x1xf32>
    %c1_4 = arith.constant 1 : index
    %c0_5 = arith.constant 0 : index
    %6 = vector.load %arg2[%c1_4, %c0_5] : memref<2x64xf32, #tpu.memory_space<vmem>>, vector<1x64xf32>
    %7 = vector.broadcast %5 : vector<8x1xf32> to vector<8x64xf32>
    %8 = vector.broadcast %6 : vector<1x64xf32> to vector<8x64xf32>
    %9 = arith.mulf %7, %8 : vector<8x64xf32>
    %10 = arith.addf %4, %9 : vector<8x64xf32>
    %c0_6 = arith.constant 0 : index
    %c0_7 = arith.constant 0 : index
    %11 = vector.load %arg3[%c0_6, %c0_7] : memref<1x64xf32, #tpu.memory_space<vmem>>, vector<1x64xf32>
    %12 = vector.broadcast %11 : vector<1x64xf32> to vector<8x64xf32>
    %13 = arith.addf %10, %12 : vector<8x64xf32>
    %cst = arith.constant 0.000000e+00 : f32
    %14 = vector.broadcast %cst : f32 to vector<8x64xf32>
    %15 = arith.maximumf %13, %14 : vector<8x64xf32>
    %c0_8 = arith.constant 0 : index
    %c0_9 = arith.constant 0 : index
    %16 = vector.load %arg4[%c0_8, %c0_9] : memref<64x64xf32, #tpu.memory_space<vmem>>, vector<64x64xf32>
    %cst_10 = arith.constant dense<0.000000e+00> : vector<8x64xf32>
    %17 = tpu.matmul %15, %16, %cst_10 {dimension_numbers = #tpu.dot_dimension_numbers<[1], [0], [0], [1], [0, 0, 1, 1], [], []>} : vector<8x64xf32>, vector<64x64xf32>, vector<8x64xf32> -> vector<8x64xf32>
    %c0_11 = arith.constant 0 : index
    %c0_12 = arith.constant 0 : index
    %18 = vector.load %arg5[%c0_11, %c0_12] : memref<1x64xf32, #tpu.memory_space<vmem>>, vector<1x64xf32>
    %19 = vector.broadcast %18 : vector<1x64xf32> to vector<8x64xf32>
    %20 = arith.addf %17, %19 : vector<8x64xf32>
    %cst_13 = arith.constant 0.000000e+00 : f32
    %21 = vector.broadcast %cst_13 : f32 to vector<8x64xf32>
    %22 = arith.maximumf %20, %21 : vector<8x64xf32>
    %c0_14 = arith.constant 0 : index
    %c0_15 = arith.constant 0 : index
    %23 = vector.load %arg6[%c0_14, %c0_15] : memref<64x128xf32, #tpu.memory_space<vmem>>, vector<64x128xf32>
    %cst_16 = arith.constant dense<0.000000e+00> : vector<8x128xf32>
    %24 = tpu.matmul %22, %23, %cst_16 {dimension_numbers = #tpu.dot_dimension_numbers<[1], [0], [0], [1], [0, 0, 1, 1], [], []>} : vector<8x64xf32>, vector<64x128xf32>, vector<8x128xf32> -> vector<8x128xf32>
    %c0_17 = arith.constant 0 : index
    %c0_18 = arith.constant 0 : index
    %25 = vector.load %arg7[%c0_17, %c0_18] : memref<1x128xf32, #tpu.memory_space<vmem>>, vector<1x128xf32>
    %26 = vector.broadcast %25 : vector<1x128xf32> to vector<8x128xf32>
    %27 = arith.addf %24, %26 : vector<8x128xf32>
    %c0_19 = arith.constant 0 : index
    %c0_20 = arith.constant 0 : index
    %28 = vector.load %arg8[%c0_19, %c0_20] : memref<8x128xf32, #tpu.memory_space<vmem>>, vector<8x128xf32>
    tpu.vector_store %arg8[%c0_19, %c0_20], %27 {strides = array<i32>} : memref<8x128xf32, #tpu.memory_space<vmem>>, vector<8x128xf32>,
    return
  }
  func.func @transform_0(%arg0: i32) -> (i32, i32) {
    %c0_i32 = arith.constant 0 : i32
    %c0_i32_0 = arith.constant 0 : i32
    return %arg0, %c0_i32 : i32, i32
  }
  func.func @transform_1(%arg0: i32) -> (i32, i32) {
    %c0_i32 = arith.constant 0 : i32
    %c0_i32_0 = arith.constant 0 : i32
    %c0_i32_1 = arith.constant 0 : i32
    return %c0_i32, %c0_i32_0 : i32, i32
  }
  func.func @transform_2(%arg0: i32) -> (i32, i32) {
    %c0_i32 = arith.constant 0 : i32
    %c0_i32_0 = arith.constant 0 : i32
    %c0_i32_1 = arith.constant 0 : i32
    return %c0_i32, %c0_i32_0 : i32, i32
  }
  func.func @transform_3(%arg0: i32) -> (i32, i32) {
    %c0_i32 = arith.constant 0 : i32
    %c0_i32_0 = arith.constant 0 : i32
    %c0_i32_1 = arith.constant 0 : i32
    return %c0_i32, %c0_i32_0 : i32, i32
  }
  func.func @transform_4(%arg0: i32) -> (i32, i32) {
    %c0_i32 = arith.constant 0 : i32
    %c0_i32_0 = arith.constant 0 : i32
    %c0_i32_1 = arith.constant 0 : i32
    return %c0_i32, %c0_i32_0 : i32, i32
  }
  func.func @transform_5(%arg0: i32) -> (i32, i32) {
    %c0_i32 = arith.constant 0 : i32
    %c0_i32_0 = arith.constant 0 : i32
    %c0_i32_1 = arith.constant 0 : i32
    return %c0_i32, %c0_i32_0 : i32, i32
  }
  func.func @transform_6(%arg0: i32) -> (i32, i32) {
    %c0_i32 = arith.constant 0 : i32
    %c0_i32_0 = arith.constant 0 : i32
    %c0_i32_1 = arith.constant 0 : i32
    return %c0_i32, %c0_i32_0 : i32, i32
  }
  func.func @transform_7(%arg0: i32) -> (i32, i32) {
    %c0_i32 = arith.constant 0 : i32
    %c0_i32_0 = arith.constant 0 : i32
    return %arg0, %c0_i32 : i32, i32
  }
}

</mosaic_0001>

<llo_original>
// kernel: tpu_custom_call.1
$region0: #{tpu_custom_call.1}
  #allocation0 [shape = 'u32[]', space=smem, size = 0x4, offset = 0x4, fixed_abs, tag = 'smem constant byte address 0x4 - core index']
  #allocation1 [shape = 'u32[144,128]{1,0:T(1,128)}', space=vmem, size = 0x12000, scoped, tag = 'internal scratch']
  %s0 = inlined_call_operand.vmem [shape: f32[8,2], index: 0, kind: input, shape index: {}]
  %s1 = inlined_call_operand.vmem [shape: f32[2,64], index: 1, kind: input, shape index: {}]
  %s2 = inlined_call_operand.vmem [shape: f32[1,64], index: 2, kind: input, shape index: {}]
  %s3 = inlined_call_operand.hbm [shape: f32[64,64], index: 3, kind: input, shape index: {}]
  %s4 = inlined_call_operand.vmem [shape: f32[1,64], index: 4, kind: input, shape index: {}]
  %s5 = inlined_call_operand.hbm [shape: f32[64,128], index: 5, kind: input, shape index: {}]
  %s6 = inlined_call_operand.vmem [shape: f32[1,128], index: 6, kind: input, shape index: {}]
  %s7 = inlined_call_operand.hbm [shape: f32[8,128], index: 7, kind: output, shape index: {}]
  %s8 = sld [smem:[#allocation0]]
  $region46: #{tpu_custom_call.1} parent=0
    _
  %s10 = ssub.s32 1, %s8
  %s11 = scalar_select 0, %s10, %s8
  $region1: #{tpu_custom_call.1} parent=0
    #allocation2 [shape = 'u8[32768]{0}', space=vmem, size = 0x8000, scoped, tag = 'input window, operand 3, single buffered']
    #allocation3 [shape = 's32[1]{0}', space=sflag, size = 0x4, scoped, tag = 'scoped memory for tpu_custom_call.1']
    #allocation4 [shape = 's32[1]{0}', space=sflag, size = 0x4, scoped, tag = 'scoped memory for tpu_custom_call.1']
    #allocation5 [shape = 'u8[32768]{0}', space=vmem, size = 0x8000, scoped, tag = 'input window, operand 5, single buffered']
    #allocation6 [shape = 's32[1]{0}', space=sflag, size = 0x4, scoped, tag = 'scoped memory for tpu_custom_call.1']
    #allocation7 [shape = 'u8[4096]{0}', space=vmem, size = 0x1000, scoped, tag = 'output window, operand 0, single buffered']
    %12 = vsyncpa [#allocation3], 0
    %13 = vsyncpa [#allocation6], 0
    %14 = vsyncpa [#allocation4], 0
    // Predicated region
    $region2: #{tpu_custom_call.1} parent=1 // pred_check
      _
    $region3: #{tpu_custom_call.1} parent=1 // pred_check_branch
      %16 = sbr.rel (0) target = $region5
    $region4: #{tpu_custom_call.1} parent=1 // pred_region
      _
    $region5: #{tpu_custom_call.1} parent=1 // pred_fallthru
      _
    // Predicated region
    $region6: #{tpu_custom_call.1} parent=1 // pred_check
      _
    $region7: #{tpu_custom_call.1} parent=1 // pred_check_branch
      %18 = sbr.rel (0) target = $region9
    $region8: #{tpu_custom_call.1} parent=1 // pred_region
      _
    $region9: #{tpu_custom_call.1} parent=1 // pred_fallthru
      _
    // Predicated region
    $region10: #{tpu_custom_call.1} parent=1 // pred_check
      _
    $region11: #{tpu_custom_call.1} parent=1 // pred_check_branch
      %20 = sbr.rel (0) target = $region13
    $region12: #{tpu_custom_call.1} parent=1 // pred_region
      _
    $region13: #{tpu_custom_call.1} parent=1 // pred_fallthru
      _
    // Predicated region
    $region14: #{tpu_custom_call.1} parent=1 // pred_check
      _
    $region15: #{tpu_custom_call.1} parent=1 // pred_check_branch
      %22 = sbr.rel (0) target = $region17
    $region16: #{tpu_custom_call.1} parent=1 // pred_region
      %s24 = ssub.s32 1024, 1024
      %25 = vsyncadd [#allocation3], %s24
      %s26 = sshll.u32 [#allocation2], 4
      %s27 = int_to_ptr.vmem [resolvable:$true] %s26
      %32 = dma.hbm_to_vmem [thread:$0]  %s3, 1024, %s27, [#allocation3], 128, 128, 8
    $region17: #{tpu_custom_call.1} parent=1 // pred_fallthru
      _
    // Predicated region
    $region18: #{tpu_custom_call.1} parent=1 // pred_check
      _
    $region19: #{tpu_custom_call.1} parent=1 // pred_check_branch
      %34 = sbr.rel (0) target = $region21
    $region20: #{tpu_custom_call.1} parent=1 // pred_region
      _
    $region21: #{tpu_custom_call.1} parent=1 // pred_fallthru
      _
    // Predicated region
    $region22: #{tpu_custom_call.1} parent=1 // pred_check
      _
    $region23: #{tpu_custom_call.1} parent=1 // pred_check_branch
      %36 = sbr.rel (0) target = $region25
    $region24: #{tpu_custom_call.1} parent=1 // pred_region
      %s38 = ssub.s32 1024, 1024
      %39 = vsyncadd [#allocation6], %s38
      %s40 = sshll.u32 [#allocation5], 4
      %s41 = int_to_ptr.vmem [resolvable:$true] %s40
      %46 = dma.hbm_to_vmem [thread:$0]  %s5, 1024, %s41, [#allocation6], 128, 128, 8
    $region25: #{tpu_custom_call.1} parent=1 // pred_fallthru
      _
    // Predicated region
    $region26: #{tpu_custom_call.1} parent=1 // pred_check
      _
    $region27: #{tpu_custom_call.1} parent=1 // pred_check_branch
      %48 = sbr.rel (0) target = $region29
    $region28: #{tpu_custom_call.1} parent=1 // pred_region
      _
    $region29: #{tpu_custom_call.1} parent=1 // pred_fallthru
      _
    // Predicated region
    $region30: #{tpu_custom_call.1} parent=1 // pred_check
      _
    $region31: #{tpu_custom_call.1} parent=1 // pred_check_branch
      %50 = sbr.rel (0) target = $region33
    $region32: #{tpu_custom_call.1} parent=1 // pred_region
      %51 = dma.done [#allocation3], 1024
    $region33: #{tpu_custom_call.1} parent=1 // pred_fallthru
      _
    // Predicated region
    $region34: #{tpu_custom_call.1} parent=1 // pred_check
      _
    $region35: #{tpu_custom_call.1} parent=1 // pred_check_branch
      %53 = sbr.rel (0) target = $region37
    $region36: #{tpu_custom_call.1} parent=1 // pred_region
      %54 = dma.done [#allocation6], 1024
    $region37: #{tpu_custom_call.1} parent=1 // pred_fallthru
      _
    %v55 = vld [vmem:[%s0] sm:$0xff]
    %v56 = vld [vmem:[%s1] sm:$0x1]
    %58 = vset.pattern.permute.xlu0 0
    %59 = vperm.xlu0 %58, %v55
    %v60 = vpop.permute.xlu0 %59
    %v62 = vlaneseq
    %v63 = vshrl.u32 %v62, 7
    %v64 = vsub.s32 0, %v63
    %v65 = vrot.slane %v56, %v64
    %v66 = vmul.f32 %v60, %v65
    %v67 = vld [vmem:[%s1 + $0x1] sm:$0x1]
    %68 = vset.pattern.permute.xlu0 1
    %69 = vperm.xlu0 %68, %v55
    %v70 = vpop.permute.xlu0 %69
    %v72 = vlaneseq
    %v73 = vshrl.u32 %v72, 7
    %v74 = vsub.s32 0, %v73
    %v75 = vrot.slane %v67, %v74
    %v76 = vmul.f32 %v70, %v75
    %v77 = vadd.f32 %v66, %v76
    %v78 = vld [vmem:[%s2] sm:$0x1]
    %v80 = vlaneseq
    %v81 = vshrl.u32 %v80, 7
    %v82 = vsub.s32 0, %v81
    %v83 = vrot.slane %v78, %v82
    %v85 = vadd.f32 %v77, %v83
    %v86 = vmax.f32 %v85, 0.0
    %v87 = vld [vmem:[#allocation2] sm:$0xff]
    %v88 = vld [vmem:[#allocation2 + $0x8] sm:$0xff]
    %v89 = vld [vmem:[#allocation2 + $0x10] sm:$0xff]
    %v90 = vld [vmem:[#allocation2 + $0x18] sm:$0xff]
    %v91 = vld [vmem:[#allocation2 + $0x20] sm:$0xff]
    %v92 = vld [vmem:[#allocation2 + $0x28] sm:$0xff]
    %v93 = vld [vmem:[#allocation2 + $0x30] sm:$0xff]
    %v94 = vld [vmem:[#allocation2 + $0x38] sm:$0xff]
    %v95 = vld [vmem:[%s4] sm:$0x1]
    %v97 = vlaneseq
    %v98 = vshrl.u32 %v97, 7
    %v99 = vsub.s32 0, %v98
    %v100 = vrot.slane %v95, %v99
    %vm102 = vcmask 523264
    %v104 = vsel %vm102, %v86, 0
    %106 = vmatprep.subr.mxu0 0.0
    %107 = vmatpush1.msra.mxu0 0.0
    %108 = vmatprep.subr.mxu0 0.0
    %109 = vmatpush1.msra.mxu0 0.0
    %110 = vmatprep.subr.mxu0 0.0
    %111 = vmatpush1.msra.mxu0 0.0
    %112 = vmatprep.subr.mxu0 0.0
    %113 = vmatpush1.msra.mxu0 0.0
    %114 = vmatprep.subr.mxu0 0.0
    %115 = vmatpush1.msra.mxu0 0.0
    %116 = vmatprep.subr.mxu0 0.0
    %117 = vmatpush1.msra.mxu0 0.0
    %118 = vmatprep.subr.mxu0 0.0
    %119 = vmatpush1.msra.mxu0 0.0
    %120 = vmatprep.subr.mxu0 0.0
    %121 = vmatpush1.msra.mxu0 0.0
    %122 = vmatprep.subr.mxu0 0.0
    %123 = vmatpush1.msra.mxu0 %v94
    %124 = vmatprep.subr.mxu0 0.0
    %125 = vmatpush1.msra.mxu0 %v93
    %126 = vmatprep.subr.mxu0 0.0
    %127 = vmatpush1.msra.mxu0 %v92
    %128 = vmatprep.subr.mxu0 0.0
    %129 = vmatpush1.msra.mxu0 %v91
    %130 = vmatprep.subr.mxu0 0.0
    %131 = vmatpush1.msra.mxu0 %v90
    %132 = vmatprep.subr.mxu0 0.0
    %133 = vmatpush1.msra.mxu0 %v89
    %134 = vmatprep.subr.mxu0 0.0
    %135 = vmatpush1.msra.mxu0 %v88
    %136 = vmatprep.subr.mxu0 0.0
    %137 = vmatpush1.msra.mxu0 %v87
    %138 = vmatprep.subr.mxu0 0.0
    %139 = vmatpush2.msra.mxu0 0.0
    %140 = vmatprep.subr.mxu0 0.0
    %141 = vmatpush2.msra.mxu0 0.0
    %142 = vmatprep.subr.mxu0 0.0
    %143 = vmatpush2.msra.mxu0 0.0
    %144 = vmatprep.subr.mxu0 0.0
    %145 = vmatpush2.msra.mxu0 0.0
    %146 = vmatprep.subr.mxu0 0.0
    %147 = vmatpush2.msra.mxu0 0.0
    %148 = vmatprep.subr.mxu0 0.0
    %149 = vmatpush2.msra.mxu0 0.0
    %150 = vmatprep.subr.mxu0 0.0
    %151 = vmatpush2.msra.mxu0 0.0
    %152 = vmatprep.subr.mxu0 0.0
    %153 = vmatpush2.msra.mxu0 0.0
    %154 = vmatprep.subr.mxu0 0.0
    %155 = vmatpush2.msra.mxu0 0.0
    %156 = vmatprep.subr.mxu0 0.0
    %157 = vmatpush2.msra.mxu0 0.0
    %158 = vmatprep.subr.mxu0 0.0
    %159 = vmatpush2.msra.mxu0 0.0
    %160 = vmatprep.subr.mxu0 0.0
    %161 = vmatpush2.msra.mxu0 0.0
    %162 = vmatprep.subr.mxu0 0.0
    %163 = vmatpush2.msra.mxu0 0.0
    %164 = vmatprep.subr.mxu0 0.0
    %165 = vmatpush2.msra.mxu0 0.0
    %166 = vmatprep.subr.mxu0 0.0
    %167 = vmatpush2.msra.mxu0 0.0
    %168 = vmatprep.subr.mxu0 0.0
    %169 = vmatpush2.msra.mxu0 0.0
    %170 = vmatprep.mubr.f32.mxu0 0.0
    %171 = vmatmul.mubr.f32.gmra.mxu0 %v104
    %v172 = vpop.f32.mrf.mxu0
    %v173 = vadd.f32 %v100, %v172
    %v174 = vpop.f32.mrf.mxu0
    %175 = vdwg.mxu0
    %v176 = vmax.f32 %v173, 0.0
    %v177 = vld [vmem:[#allocation5] sm:$0xff]
    %v178 = vld [vmem:[#allocation5 + $0x8] sm:$0xff]
    %v179 = vld [vmem:[#allocation5 + $0x10] sm:$0xff]
    %v180 = vld [vmem:[#allocation5 + $0x18] sm:$0xff]
    %v181 = vld [vmem:[#allocation5 + $0x20] sm:$0xff]
    %v182 = vld [vmem:[#allocation5 + $0x28] sm:$0xff]
    %v183 = vld [vmem:[#allocation5 + $0x30] sm:$0xff]
    %v184 = vld [vmem:[#allocation5 + $0x38] sm:$0xff]
    %v185 = vld [vmem:[%s6] sm:$0x1]
    %v187 = vlaneseq
    %v188 = vshrl.u32 %v187, 7
    %v189 = vsub.s32 0, %v188
    %v190 = vrot.slane %v185, %v189
    %v193 = vsel %vm102, %v176, 0
    %195 = vmatprep.subr.mxu0 0.0
    %196 = vmatpush1.msra.mxu0 0.0
    %197 = vmatprep.subr.mxu0 0.0
    %198 = vmatpush1.msra.mxu0 0.0
    %199 = vmatprep.subr.mxu0 0.0
    %200 = vmatpush1.msra.mxu0 0.0
    %201 = vmatprep.subr.mxu0 0.0
    %202 = vmatpush1.msra.mxu0 0.0
    %203 = vmatprep.subr.mxu0 0.0
    %204 = vmatpush1.msra.mxu0 0.0
    %205 = vmatprep.subr.mxu0 0.0
    %206 = vmatpush1.msra.mxu0 0.0
    %207 = vmatprep.subr.mxu0 0.0
    %208 = vmatpush1.msra.mxu0 0.0
    %209 = vmatprep.subr.mxu0 0.0
    %210 = vmatpush1.msra.mxu0 0.0
    %211 = vmatprep.subr.mxu0 0.0
    %212 = vmatpush1.msra.mxu0 %v184
    %213 = vmatprep.subr.mxu0 0.0
    %214 = vmatpush1.msra.mxu0 %v183
    %215 = vmatprep.subr.mxu0 0.0
    %216 = vmatpush1.msra.mxu0 %v182
    %217 = vmatprep.subr.mxu0 0.0
    %218 = vmatpush1.msra.mxu0 %v181
    %219 = vmatprep.subr.mxu0 0.0
    %220 = vmatpush1.msra.mxu0 %v180
    %221 = vmatprep.subr.mxu0 0.0
    %222 = vmatpush1.msra.mxu0 %v179
    %223 = vmatprep.subr.mxu0 0.0
    %224 = vmatpush1.msra.mxu0 %v178
    %225 = vmatprep.subr.mxu0 0.0
    %226 = vmatpush1.msra.mxu0 %v177
    %227 = vmatprep.subr.mxu0 0.0
    %228 = vmatpush2.msra.mxu0 0.0
    %229 = vmatprep.subr.mxu0 0.0
    %230 = vmatpush2.msra.mxu0 0.0
    %231 = vmatprep.subr.mxu0 0.0
    %232 = vmatpush2.msra.mxu0 0.0
    %233 = vmatprep.subr.mxu0 0.0
    %234 = vmatpush2.msra.mxu0 0.0
    %235 = vmatprep.subr.mxu0 0.0
    %236 = vmatpush2.msra.mxu0 0.0
    %237 = vmatprep.subr.mxu0 0.0
    %238 = vmatpush2.msra.mxu0 0.0
    %239 = vmatprep.subr.mxu0 0.0
    %240 = vmatpush2.msra.mxu0 0.0
    %241 = vmatprep.subr.mxu0 0.0
    %242 = vmatpush2.msra.mxu0 0.0
    %243 = vmatprep.subr.mxu0 0.0
    %244 = vmatpush2.msra.mxu0 0.0
    %245 = vmatprep.subr.mxu0 0.0
    %246 = vmatpush2.msra.mxu0 0.0
    %247 = vmatprep.subr.mxu0 0.0
    %248 = vmatpush2.msra.mxu0 0.0
    %249 = vmatprep.subr.mxu0 0.0
    %250 = vmatpush2.msra.mxu0 0.0
    %251 = vmatprep.subr.mxu0 0.0
    %252 = vmatpush2.msra.mxu0 0.0
    %253 = vmatprep.subr.mxu0 0.0
    %254 = vmatpush2.msra.mxu0 0.0
    %255 = vmatprep.subr.mxu0 0.0
    %256 = vmatpush2.msra.mxu0 0.0
    %257 = vmatprep.subr.mxu0 0.0
    %258 = vmatpush2.msra.mxu0 0.0
    %259 = vmatprep.mubr.f32.mxu0 0.0
    %260 = vmatmul.mubr.f32.gmra.mxu0 %v193
    %v261 = vpop.f32.mrf.mxu0
    %v262 = vadd.f32 %v190, %v261
    %v263 = vpop.f32.mrf.mxu0
    %264 = vdwg.mxu0
    %265 = vst [vmem:[#allocation7] sm:$0xff] %v262
    // Predicated region
    $region38: #{tpu_custom_call.1} parent=1 // pred_check
      _
    $region39: #{tpu_custom_call.1} parent=1 // pred_check_branch
      %267 = sbr.rel (0) target = $region41
    $region40: #{tpu_custom_call.1} parent=1 // pred_region
      %s269 = ssub.s32 128, 128
      %270 = vsyncadd [#allocation4], %s269
      %s272 = sshll.u32 [#allocation7], 4
      %s273 = int_to_ptr.vmem [resolvable:$true] %s272
      %275 = dma.vmem_to_hbm [thread:$0]  %s273, 128, %s7, [#allocation4]
    $region41: #{tpu_custom_call.1} parent=1 // pred_fallthru
      _
    // Predicated region
    $region42: #{tpu_custom_call.1} parent=1 // pred_check
      _
    $region43: #{tpu_custom_call.1} parent=1 // pred_check_branch
      %277 = sbr.rel (0) target = $region45
    $region44: #{tpu_custom_call.1} parent=1 // pred_region
      %278 = dma.done [#allocation4], 128
    $region45: #{tpu_custom_call.1} parent=1 // pred_fallthru
      _
    %279 = vsyncpa [#allocation3], 1
    %280 = vsyncpa [#allocation6], 1
    %281 = vsyncpa [#allocation4], 1

</llo_original>
